<compile_context>
chip_gen: v5e
topology: v5e:2x2
jax: 0.10.0
libtpu: 0.0.40
codegen_flags: <defaults>
</compile_context>

<pallas_src>
import jax
import jax.numpy as jnp
from jax.experimental import pallas as pl
from jax.experimental.pallas import tpu as pltpu

_LANE = 128                               # lane width of a vreg
_TARGET_BLOCK_BYTES = 4 * 1024 * 1024     # ~4 MiB per grid step
_VMEM_LIMIT_BYTES = 32 * 1024 * 1024      # safe on v5e/v6e (128 MiB) & v7x (64 MiB)


def _copy_kernel(x_ref, o_ref):
    # Pure data movement: a view has no arithmetic.
    o_ref[...] = x_ref[...]


def _pallas_flat_copy(flat):
    """Stream a 1-D row-major buffer through a Pallas VMEM copy kernel."""
    n = int(flat.shape[0])
    itemsize = jnp.dtype(flat.dtype).itemsize

    # View the stream as (rows, 128).  If n is not a 128-multiple (rare for
    # activation tensors), pad by <=127 elements and slice the result back.
    rows = pl.cdiv(n, _LANE)
    n_padded = rows * _LANE
    if n_padded != n:
        flat = jnp.pad(flat, (0, n_padded - n))
    x2d = flat.reshape(rows, _LANE)

    # Large lane-dense blocks: ~4 MiB each.  Row count per block is a multiple
    # of 32 so the sublane granularity is legal for every dtype width.
    target_rows = _TARGET_BLOCK_BYTES // (_LANE * itemsize)
    target_rows = max(32, (target_rows // 32) * 32)
    if rows <= target_rows:
        block_rows = rows          # single full-extent block (full dims allowed)
    else:
        block_rows = target_rows   # ragged trailing block is masked by Pallas
    grid = (pl.cdiv(rows, block_rows),)

    out = pl.pallas_call(
        _copy_kernel,
        out_shape=jax.ShapeDtypeStruct((rows, _LANE), flat.dtype),
        grid_spec=pltpu.PrefetchScalarGridSpec(
            num_scalar_prefetch=0,
            grid=grid,
            in_specs=[pl.BlockSpec((block_rows, _LANE), lambda i: (i, 0))],
            out_specs=pl.BlockSpec((block_rows, _LANE), lambda i: (i, 0)),
        ),
        compiler_params=pltpu.CompilerParams(
            dimension_semantics=("parallel",),   # shards the copy over v7x's 2 TCs
            vmem_limit_bytes=_VMEM_LIMIT_BYTES,
        ),
        cost_estimate=pl.CostEstimate(
            flops=0,
            transcendentals=0,
            bytes_accessed=2 * n_padded * itemsize,
        ),
    )(x2d)

    out_flat = out.reshape(n_padded)
    if n_padded != n:
        out_flat = out_flat[:n]
    return out_flat


def _resolve_shape(shape, total):
    """Resolve a possible -1 dim exactly like torch.Tensor.view (with checks)."""
    shape = list(shape)
    if shape.count(-1) > 1:
        raise ValueError("only one dimension can be inferred (-1)")
    if -1 in shape:
        idx = shape.index(-1)
        known = 1
        for j, s in enumerate(shape):
            if j != idx:
                known *= s
        if known == 0 or total % known != 0:
            raise ValueError(
                f"cannot view array of size {total} as shape {tuple(shape)}")
        shape[idx] = total // known
    else:
        prod = 1
        for s in shape:
            prod *= s
        if prod != total:
            raise ValueError(
                f"cannot view array of size {total} as shape {tuple(shape)}")
    return tuple(shape)


class Reshape:
    """JAX/Pallas equivalent of the PyTorch Reshape module (x.view(shape))."""

    def __init__(self, *args):
        self.shape = args

    def __call__(self, x):
        target = _resolve_shape(self.shape, x.size)
        flat = x.reshape(-1)               # row-major flatten (metadata glue)
        copied = _pallas_flat_copy(flat)   # data movement in Pallas (hot path)
        return copied.reshape(target)      # target shape (metadata glue)


if __name__ == "__main__":
    key = jax.random.PRNGKey(0)

    # Small NCHW-style input: (batch=2, channels=4, H=16, W=16) = 2048 elems.
    x = jax.random.normal(key, (2, 4, 16, 16), dtype=jnp.float32)

    # Mirror e.g. Reshape(2, 4, 256): flatten spatial dims.
    y = jax.block_until_ready(Reshape(2, 4, 256)(x))
    assert y.shape == (2, 4, 256)
    assert y.dtype == x.dtype
    assert bool(jnp.array_equal(y, x.reshape(2, 4, 256)))

    # -1 dim, like Reshape(-1, 64).
    y2 = jax.block_until_ready(Reshape(-1, 64)(x))
    assert y2.shape == (32, 64)
    assert bool(jnp.array_equal(y2, x.reshape(-1, 64)))

    # bf16 activations (common case in the TTS model) — dtype-aware path.
    x_bf = x.astype(jnp.bfloat16)
    y3 = jax.block_until_ready(Reshape(2, -1)(x_bf))
    assert y3.shape == (2, 1024) and y3.dtype == jnp.bfloat16
    assert bool(jnp.array_equal(y3, x_bf.reshape(2, 1024)))

    # Non-128-multiple element count exercises the pad-and-slice path.
    x_odd = jax.random.normal(key, (3, 5, 7), dtype=jnp.float32)  # 105 elems
    y4 = jax.block_until_ready(Reshape(5, 21)(x_odd))
    assert y4.shape == (5, 21)
    assert bool(jnp.array_equal(y4, x_odd.reshape(5, 21)))

    print("KERNEL_OK")
</pallas_src>

<mosaic_0001>
module attributes {stable_mosaic.version = 11 : i64} {
  func.func @_copy_kernel(%arg0: i32, %arg1: memref<16x128xf32, #tpu.memory_space<vmem>>, %arg2: memref<16x128xf32, #tpu.memory_space<vmem>>) attributes {dimension_semantics = [#tpu.dimension_semantics<parallel>], iteration_bounds = array<i64: 1>, scalar_prefetch = 0 : i64, scratch_operands = 0 : i64, tpu.core_type = #tpu.core_type<tc>, window_params = [{transform_indices = @transform_0, window_bounds = array<i64: 16, 128>}, {transform_indices = @transform_1, window_bounds = array<i64: 16, 128>}]} {
    %c0 = arith.constant 0 : index
    %c0_0 = arith.constant 0 : index
    %0 = vector.load %arg1[%c0, %c0_0] : memref<16x128xf32, #tpu.memory_space<vmem>>, vector<16x128xf32>
    %c0_1 = arith.constant 0 : index
    %c0_2 = arith.constant 0 : index
    %1 = vector.load %arg2[%c0_1, %c0_2] : memref<16x128xf32, #tpu.memory_space<vmem>>, vector<16x128xf32>
    tpu.vector_store %arg2[%c0_1, %c0_2], %0 {strides = array<i32>} : memref<16x128xf32, #tpu.memory_space<vmem>>, vector<16x128xf32>,
    return
  }
  func.func @transform_0(%arg0: i32) -> (i32, i32) {
    %c0_i32 = arith.constant 0 : i32
    %c0_i32_0 = arith.constant 0 : i32
    return %arg0, %c0_i32 : i32, i32
  }
  func.func @transform_1(%arg0: i32) -> (i32, i32) {
    %c0_i32 = arith.constant 0 : i32
    %c0_i32_0 = arith.constant 0 : i32
    return %arg0, %c0_i32 : i32, i32
  }
}

</mosaic_0001>

<llo_original>
// kernel: tpu_custom_call.1
$region0: #{tpu_custom_call.1}
  #allocation0 [shape = 'u32[]', space=smem, size = 0x4, offset = 0x4, fixed_abs, tag = 'smem constant byte address 0x4 - core index']
  #allocation1 [shape = 'u32[72,128]{1,0:T(1,128)}', space=vmem, size = 0x9000, scoped, tag = 'internal scratch']
  %s0 = inlined_call_operand.hbm [shape: f32[16,128], index: 0, kind: input, shape index: {}]
  %s1 = inlined_call_operand.hbm [shape: f32[16,128], index: 1, kind: output, shape index: {}]
  %s2 = sld [smem:[#allocation0]]
  $region18: #{tpu_custom_call.1} parent=0
    _
  %s4 = ssub.s32 1, %s2
  %s5 = scalar_select 0, %s4, %s2
  $region1: #{tpu_custom_call.1} parent=0
    #allocation2 [shape = 'u8[8192]{0}', space=vmem, size = 0x2000, scoped, tag = 'input window, operand 0, single buffered']
    #allocation3 [shape = 's32[1]{0}', space=sflag, size = 0x4, scoped, tag = 'scoped memory for tpu_custom_call.1']
    #allocation4 [shape = 's32[1]{0}', space=sflag, size = 0x4, scoped, tag = 'scoped memory for tpu_custom_call.1']
    #allocation5 [shape = 'u8[8192]{0}', space=vmem, size = 0x2000, scoped, tag = 'output window, operand 0, single buffered']
    %6 = vsyncpa [#allocation3], 0
    %7 = vsyncpa [#allocation4], 0
    // Predicated region
    $region2: #{tpu_custom_call.1} parent=1 // pred_check
      _
    $region3: #{tpu_custom_call.1} parent=1 // pred_check_branch
      %9 = sbr.rel (0) target = $region5
    $region4: #{tpu_custom_call.1} parent=1 // pred_region
      %11 = vsyncadd [#allocation3], 0
      %s12 = sshll.u32 %s0, 4
      %s13 = int_to_ptr.hbm [resolvable:$true] %s12
      %s14 = sshll.u32 [#allocation2], 4
      %s15 = int_to_ptr.vmem [resolvable:$true] %s14
      %20 = dma.hbm_to_vmem [thread:$0]  %s13, 256, %s15, [#allocation3], 128, 128, 8
    $region5: #{tpu_custom_call.1} parent=1 // pred_fallthru
      _
    // Predicated region
    $region6: #{tpu_custom_call.1} parent=1 // pred_check
      _
    $region7: #{tpu_custom_call.1} parent=1 // pred_check_branch
      %22 = sbr.rel (0) target = $region9
    $region8: #{tpu_custom_call.1} parent=1 // pred_region
      %24 = dma.done [#allocation3], 256
    $region9: #{tpu_custom_call.1} parent=1 // pred_fallthru
      _
    %v25 = vld [vmem:[#allocation2] sm:$0xff]
    %v26 = vld [vmem:[#allocation2 + $0x8] sm:$0xff]
    %27 = vst [vmem:[#allocation5] sm:$0xff] %v25
    %28 = vst [vmem:[#allocation5 + $0x8] sm:$0xff] %v26
    // Predicated region
    $region10: #{tpu_custom_call.1} parent=1 // pred_check
      _
    $region11: #{tpu_custom_call.1} parent=1 // pred_check_branch
      %30 = sbr.rel (0) target = $region13
    $region12: #{tpu_custom_call.1} parent=1 // pred_region
      %32 = vsyncadd [#allocation4], 0
      %s33 = sshll.u32 [#allocation5], 4
      %s34 = int_to_ptr.vmem [resolvable:$true] %s33
      %s35 = sshll.u32 %s1, 4
      %s36 = int_to_ptr.hbm [resolvable:$true] %s35
      %41 = dma.vmem_to_hbm [thread:$0]  %s34, 256, %s36, [#allocation4], 128, 128, 8
    $region13: #{tpu_custom_call.1} parent=1 // pred_fallthru
      _
    // Predicated region
    $region14: #{tpu_custom_call.1} parent=1 // pred_check
      _
    $region15: #{tpu_custom_call.1} parent=1 // pred_check_branch
      %43 = sbr.rel (0) target = $region17
    $region16: #{tpu_custom_call.1} parent=1 // pred_region
      %45 = dma.done [#allocation4], 256
    $region17: #{tpu_custom_call.1} parent=1 // pred_fallthru
      _
    %46 = vsyncpa [#allocation3], 1
    %47 = vsyncpa [#allocation4], 1

</llo_original>
